<compile_context>
chip_gen: v5e
topology: v5e:2x2
jax: 0.10.0
libtpu: 0.0.40
codegen_flags: <defaults>
</compile_context>

<pallas_src>
import functools

import jax
import jax.numpy as jnp
from jax.experimental import pallas as pl
from jax.experimental.pallas import tpu as pltpu

BN_EPS = 1e-5
L2_EPS = 1e-12
LANE = 128
ROW_ALIGN = 16          # bf16 packs 16 rows per sublane pair -> avoid half-packed vregs
MAX_TILE_B = 512        # soft cap; actual tile derived from the per-device VMEM budget
VMEM_FRACTION = 0.75    # headroom under physical VMEM for compiler scratch


def _round_up(x, m):
    return ((x + m - 1) // m) * m


@functools.lru_cache(maxsize=1)
def _vmem_capacity_bytes():
    try:
        return int(pltpu.get_tpu_info().vmem_capacity_bytes)
    except Exception:
        return 64 * 2**20   # v7x floor -> safe on every generation


def _resident_spec(shape):
    """Constant-index (VMEM-resident) operand; single-buffered when supported."""
    idx = lambda i: (0, 0)
    try:
        return pl.BlockSpec(shape, idx, pipeline_mode=pl.Buffered(1))
    except (AttributeError, TypeError):
        return pl.BlockSpec(shape, idx)


# ---------------------------------------------------------------------------
# Kernels
# ---------------------------------------------------------------------------
def _nonlinear_head_kernel(x_ref, w1_ref, b1_ref, w2_ref, scale_ref, shift_ref, o_ref):
    # In-kernel bf16 cast of the f32 input tile (cheap VPU op, saves an HBM pass).
    x = x_ref[...].astype(jnp.bfloat16)
    # Linear(in -> hidden, bias=True): bf16 operands on the MXU, f32 accumulate.
    h = jnp.dot(x, w1_ref[...], preferred_element_type=jnp.float32)
    h = jnp.maximum(h + b1_ref[...], 0.0)                       # bias + ReLU (f32 VPU)
    # Linear(hidden -> out, bias=False), then inference BN as an f32 affine.
    y = jnp.dot(h.astype(jnp.bfloat16), w2_ref[...],
                preferred_element_type=jnp.float32)
    y = y * scale_ref[...] + shift_ref[...]
    # L2 normalization along the feature dim: XLU reduce + EUP rsqrt (no divide).
    sumsq = jnp.sum(y * y, axis=-1, keepdims=True)
    o_ref[...] = (y * jax.lax.rsqrt(jnp.maximum(sumsq, L2_EPS * L2_EPS))).astype(o_ref.dtype)


def _linear_head_kernel(x_ref, w_ref, scale_ref, shift_ref, o_ref):
    x = x_ref[...].astype(jnp.bfloat16)
    y = jnp.dot(x, w_ref[...], preferred_element_type=jnp.float32)
    y = y * scale_ref[...] + shift_ref[...]
    sumsq = jnp.sum(y * y, axis=-1, keepdims=True)
    o_ref[...] = (y * jax.lax.rsqrt(jnp.maximum(sumsq, L2_EPS * L2_EPS))).astype(o_ref.dtype)


# ---------------------------------------------------------------------------
# Parameters (deterministic synthetic init, PyTorch-equivalent shapes)
# ---------------------------------------------------------------------------
def make_projection_head_params(key, in_features, hidden_features, out_features,
                                head_type="nonlinear"):
    if head_type == "nonlinear":
        k1, k2, k3, k4 = jax.random.split(key, 4)
        return {
            # stored as [in, out] so the kernel can do x @ W directly
            "w1": jax.random.normal(k1, (in_features, hidden_features), jnp.float32) * 0.05,
            "b1": jax.random.normal(k2, (1, hidden_features), jnp.float32) * 0.01,
            "w2": jax.random.normal(k3, (hidden_features, out_features), jnp.float32) * 0.05,
            "gamma": jnp.ones((1, out_features), jnp.float32),
            "beta": jnp.zeros((1, out_features), jnp.float32),
            "running_mean": jax.random.normal(k4, (1, out_features), jnp.float32) * 0.01,
            "running_var": jnp.ones((1, out_features), jnp.float32),
        }
    elif head_type == "linear":
        k1, k2 = jax.random.split(key, 2)
        return {
            "w": jax.random.normal(k1, (in_features, out_features), jnp.float32) * 0.05,
            "gamma": jnp.ones((1, out_features), jnp.float32),
            "beta": jnp.zeros((1, out_features), jnp.float32),
            "running_mean": jax.random.normal(k2, (1, out_features), jnp.float32) * 0.01,
            "running_var": jnp.ones((1, out_features), jnp.float32),
        }
    raise ValueError('head_type must be either "linear" or "nonlinear".')


# ---------------------------------------------------------------------------
# Wrapper: padding, BN prep, VMEM-derived batch tiling, pallas_call
# ---------------------------------------------------------------------------
@functools.partial(jax.jit, static_argnames=("head_type",))
def projection_head_forward(x, params, head_type="nonlinear"):
    """Pallas-fused ProjectionHead forward. x: [B, in_features] float32."""
    batch, in_features = x.shape
    out_features = (params["w2"] if head_type == "nonlinear" else params["w"]).shape[1]

    # Lane-align feature dims (padded cols are exactly zero -> L2 norm unchanged).
    in_p = _round_up(in_features, LANE)
    out_p = _round_up(out_features, LANE)

    # Inference BatchNorm as an f32 per-channel affine applied in the kernel
    # epilogue (kept out of the bf16 weights to avoid amplified quantization
    # error for channels with small running_var).
    scale = params["gamma"] * jax.lax.rsqrt(params["running_var"] + BN_EPS)
    shift = params["beta"] - params["running_mean"] * scale
    scale_p = jnp.pad(scale, ((0, 0), (0, out_p - out_features))).astype(jnp.float32)
    shift_p = jnp.pad(shift, ((0, 0), (0, out_p - out_features))).astype(jnp.float32)

    if head_type == "nonlinear":
        hid = params["w1"].shape[1]
        hid_p = _round_up(hid, LANE)
        w1_p = jnp.pad(params["w1"],
                       ((0, in_p - in_features), (0, hid_p - hid))).astype(jnp.bfloat16)
        b1_p = jnp.pad(params["b1"], ((0, 0), (0, hid_p - hid))).astype(jnp.float32)
        w2_p = jnp.pad(params["w2"],
                       ((0, hid_p - hid), (0, out_p - out_features))).astype(jnp.bfloat16)
        resident_bytes = in_p * hid_p * 2 + hid_p * out_p * 2 + hid_p * 4 + out_p * 8
        per_row_bytes = 10 * in_p + 6 * hid_p + 12 * out_p   # 2x(x,out) tiles + temporaries
        matmul_flops_per_row = 2 * (in_p * hid_p + hid_p * out_p)
    else:
        w_p = jnp.pad(params["w"],
                      ((0, in_p - in_features), (0, out_p - out_features))).astype(jnp.bfloat16)
        resident_bytes = in_p * out_p * 2 + out_p * 8
        per_row_bytes = 10 * in_p + 12 * out_p
        matmul_flops_per_row = 2 * in_p * out_p

    # Batch tile derived from the per-generation VMEM budget (resident weights
    # counted once; streamed x/out tiles double-buffered; kernel temporaries).
    vmem_budget = int(_vmem_capacity_bytes() * VMEM_FRACTION)
    avail = max(vmem_budget - resident_bytes, 0)
    # TODO(synk): add a K-tiled (contraction-split) fallback with an f32 VMEM
    # accumulator for heads whose resident weights alone overflow v7x's 64 MiB.
    tile_cap = min(MAX_TILE_B,
                   max(ROW_ALIGN, (avail // max(per_row_bytes, 1)) // ROW_ALIGN * ROW_ALIGN))

    batch_r = _round_up(batch, ROW_ALIGN)
    tile_b = min(tile_cap, batch_r)
    # Guarantee >=2 grid steps when possible so the "parallel" batch axis
    # actually shards across v7x's two TensorCores (no-op on v5e/v6e).
    if batch_r // tile_b < 2 and batch_r >= 2 * ROW_ALIGN:
        tile_b = max(ROW_ALIGN, (batch_r // 2) // ROW_ALIGN * ROW_ALIGN)
    batch_p = _round_up(batch, tile_b)
    grid = (batch_p // tile_b,)

    # x stays f32 in HBM; pad only if actually needed (cast happens in-kernel).
    pad_b, pad_f = batch_p - batch, in_p - in_features
    x_f32 = x.astype(jnp.float32)
    x_in = jnp.pad(x_f32, ((0, pad_b), (0, pad_f))) if (pad_b or pad_f) else x_f32

    if head_type == "nonlinear":
        kernel = _nonlinear_head_kernel
        args = (x_in, w1_p, b1_p, w2_p, scale_p, shift_p)
        in_specs = [
            pl.BlockSpec((tile_b, in_p), lambda i: (i, 0)),   # streamed, double-buffered
            _resident_spec((in_p, hid_p)),
            _resident_spec((1, hid_p)),
            _resident_spec((hid_p, out_p)),
            _resident_spec((1, out_p)),
            _resident_spec((1, out_p)),
        ]
    else:
        kernel = _linear_head_kernel
        args = (x_in, w_p, scale_p, shift_p)
        in_specs = [
            pl.BlockSpec((tile_b, in_p), lambda i: (i, 0)),
            _resident_spec((in_p, out_p)),
            _resident_spec((1, out_p)),
            _resident_spec((1, out_p)),
        ]

    # VMEM limit: what this launch actually needs (+50% headroom), clamped to
    # the device-derived budget so we never ask for more than v7x can give.
    needed = resident_bytes + tile_b * per_row_bytes + (2 << 20)
    vmem_limit = int(max(needed, min(vmem_budget, int(1.5 * needed))))

    cost = pl.CostEstimate(
        flops=batch_p * (matmul_flops_per_row + 6 * out_p),
        transcendentals=batch_p,                                    # rsqrt per row
        bytes_accessed=batch_p * in_p * 4 + resident_bytes + batch_p * out_p * 4,
    )

    out_padded = pl.pallas_call(
        kernel,
        out_shape=jax.ShapeDtypeStruct((batch_p, out_p), jnp.float32),
        grid=grid,
        in_specs=in_specs,
        out_specs=pl.BlockSpec((tile_b, out_p), lambda i: (i, 0)),
        compiler_params=pltpu.CompilerParams(
            dimension_semantics=("parallel",),        # shard batch tiles across TCs (v7x)
            vmem_limit_bytes=vmem_limit),
        cost_estimate=cost,
    )(*args)

    return out_padded[:batch, :out_features]


# ---------------------------------------------------------------------------
# Plain-JAX reference (exact f32 module semantics) for correctness checking
# ---------------------------------------------------------------------------
def _reference_forward(x, params, head_type="nonlinear"):
    if head_type == "nonlinear":
        h = jnp.maximum(x @ params["w1"] + params["b1"], 0.0)
        y = h @ params["w2"]
    else:
        y = x @ params["w"]
    y = (y - params["running_mean"]) / jnp.sqrt(params["running_var"] + BN_EPS)
    y = y * params["gamma"] + params["beta"]
    norm = jnp.sqrt(jnp.sum(y * y, axis=-1, keepdims=True))
    return y / jnp.maximum(norm, L2_EPS)


if __name__ == "__main__":
    key = jax.random.PRNGKey(0)
    kx, kp, kp2 = jax.random.split(key, 3)

    batch, in_features, hidden_features, out_features = 8, 32, 64, 16
    x = jax.random.normal(kx, (batch, in_features), jnp.float32)

    # nonlinear head (module default)
    params_nl = make_projection_head_params(kp, in_features, hidden_features,
                                            out_features, head_type="nonlinear")
    out_nl = projection_head_forward(x, params_nl, head_type="nonlinear")
    jax.block_until_ready(out_nl)
    ref_nl = _reference_forward(x, params_nl, head_type="nonlinear")
    assert out_nl.shape == (batch, out_features)
    assert jnp.allclose(out_nl, ref_nl, atol=2e-2), \
        float(jnp.max(jnp.abs(out_nl - ref_nl)))

    # linear head variant
    params_lin = make_projection_head_params(kp2, in_features, hidden_features,
                                             out_features, head_type="linear")
    out_lin = projection_head_forward(x, params_lin, head_type="linear")
    jax.block_until_ready(out_lin)
    ref_lin = _reference_forward(x, params_lin, head_type="linear")
    assert out_lin.shape == (batch, out_features)
    assert jnp.allclose(out_lin, ref_lin, atol=2e-2), \
        float(jnp.max(jnp.abs(out_lin - ref_lin)))

    print("KERNEL_OK")
</pallas_src>

<mosaic_0001>
module attributes {stable_mosaic.version = 11 : i64} {
  func.func @_nonlinear_head_kernel(%arg0: i32, %arg1: memref<16x128xf32, #tpu.memory_space<vmem>>, %arg2: memref<128x128xbf16, #tpu.memory_space<vmem>>, %arg3: memref<1x128xf32, #tpu.memory_space<vmem>>, %arg4: memref<128x128xbf16, #tpu.memory_space<vmem>>, %arg5: memref<1x128xf32, #tpu.memory_space<vmem>>, %arg6: memref<1x128xf32, #tpu.memory_space<vmem>>, %arg7: memref<16x128xf32, #tpu.memory_space<vmem>>) attributes {dimension_semantics = [#tpu.dimension_semantics<parallel>], iteration_bounds = array<i64: 1>, scalar_prefetch = 0 : i64, scratch_operands = 0 : i64, tpu.core_type = #tpu.core_type<tc>, window_params = [{transform_indices = @transform_0, window_bounds = array<i64: 16, 128>}, {pipeline_mode = #tpu.pipeline_mode<synchronous>, transform_indices = @transform_1, window_bounds = array<i64: 128, 128>}, {pipeline_mode = #tpu.pipeline_mode<synchronous>, transform_indices = @transform_2, window_bounds = array<i64: 1, 128>}, {pipeline_mode = #tpu.pipeline_mode<synchronous>, transform_indices = @transform_3, window_bounds = array<i64: 128, 128>}, {pipeline_mode = #tpu.pipeline_mode<synchronous>, transform_indices = @transform_4, window_bounds = array<i64: 1, 128>}, {pipeline_mode = #tpu.pipeline_mode<synchronous>, transform_indices = @transform_5, window_bounds = array<i64: 1, 128>}, {transform_indices = @transform_6, window_bounds = array<i64: 16, 128>}]} {
    %c0 = arith.constant 0 : index
    %c0_0 = arith.constant 0 : index
    %0 = vector.load %arg1[%c0, %c0_0] : memref<16x128xf32, #tpu.memory_space<vmem>>, vector<16x128xf32>
    %1 = arith.truncf %0 : vector<16x128xf32> to vector<16x128xbf16>
    %c0_1 = arith.constant 0 : index
    %c0_2 = arith.constant 0 : index
    %2 = vector.load %arg2[%c0_1, %c0_2] : memref<128x128xbf16, #tpu.memory_space<vmem>>, vector<128x128xbf16>
    %cst = arith.constant dense<0.000000e+00> : vector<16x128xf32>
    %3 = tpu.matmul %1, %2, %cst {dimension_numbers = #tpu.dot_dimension_numbers<[1], [0], [0], [1], [0, 0, 1, 1], [], []>} : vector<16x128xbf16>, vector<128x128xbf16>, vector<16x128xf32> -> vector<16x128xf32>
    %c0_3 = arith.constant 0 : index
    %c0_4 = arith.constant 0 : index
    %4 = vector.load %arg3[%c0_3, %c0_4] : memref<1x128xf32, #tpu.memory_space<vmem>>, vector<1x128xf32>
    %5 = vector.broadcast %4 : vector<1x128xf32> to vector<16x128xf32>
    %6 = arith.addf %3, %5 : vector<16x128xf32>
    %cst_5 = arith.constant 0.000000e+00 : f32
    %7 = vector.broadcast %cst_5 : f32 to vector<16x128xf32>
    %8 = arith.maximumf %6, %7 : vector<16x128xf32>
    %9 = arith.truncf %8 : vector<16x128xf32> to vector<16x128xbf16>
    %c0_6 = arith.constant 0 : index
    %c0_7 = arith.constant 0 : index
    %10 = vector.load %arg4[%c0_6, %c0_7] : memref<128x128xbf16, #tpu.memory_space<vmem>>, vector<128x128xbf16>
    %cst_8 = arith.constant dense<0.000000e+00> : vector<16x128xf32>
    %11 = tpu.matmul %9, %10, %cst_8 {dimension_numbers = #tpu.dot_dimension_numbers<[1], [0], [0], [1], [0, 0, 1, 1], [], []>} : vector<16x128xbf16>, vector<128x128xbf16>, vector<16x128xf32> -> vector<16x128xf32>
    %c0_9 = arith.constant 0 : index
    %c0_10 = arith.constant 0 : index
    %12 = vector.load %arg5[%c0_9, %c0_10] : memref<1x128xf32, #tpu.memory_space<vmem>>, vector<1x128xf32>
    %13 = vector.broadcast %12 : vector<1x128xf32> to vector<16x128xf32>
    %14 = arith.mulf %11, %13 : vector<16x128xf32>
    %c0_11 = arith.constant 0 : index
    %c0_12 = arith.constant 0 : index
    %15 = vector.load %arg6[%c0_11, %c0_12] : memref<1x128xf32, #tpu.memory_space<vmem>>, vector<1x128xf32>
    %16 = vector.broadcast %15 : vector<1x128xf32> to vector<16x128xf32>
    %17 = arith.addf %14, %16 : vector<16x128xf32>
    %18 = arith.mulf %17, %17 : vector<16x128xf32>
    %cst_13 = arith.constant dense<0.000000e+00> : vector<16xf32>
    %19 = vector.multi_reduction <add>, %18, %cst_13 [1] : vector<16x128xf32> to vector<16xf32>
    %20 = vector.shape_cast %19 : vector<16xf32> to vector<16x1xf32>
    %cst_14 = arith.constant 1.000000e-24 : f32
    %21 = vector.broadcast %cst_14 : f32 to vector<16x1xf32>
    %22 = arith.maximumf %20, %21 : vector<16x1xf32>
    %23 = math.rsqrt %22 : vector<16x1xf32>
    %24 = vector.broadcast %23 : vector<16x1xf32> to vector<16x128xf32>
    %25 = arith.mulf %17, %24 : vector<16x128xf32>
    %c0_15 = arith.constant 0 : index
    %c0_16 = arith.constant 0 : index
    %26 = vector.load %arg7[%c0_15, %c0_16] : memref<16x128xf32, #tpu.memory_space<vmem>>, vector<16x128xf32>
    tpu.vector_store %arg7[%c0_15, %c0_16], %25 {strides = array<i32>} : memref<16x128xf32, #tpu.memory_space<vmem>>, vector<16x128xf32>,
    return
  }
  func.func @transform_0(%arg0: i32) -> (i32, i32) {
    %c0_i32 = arith.constant 0 : i32
    %c0_i32_0 = arith.constant 0 : i32
    return %arg0, %c0_i32 : i32, i32
  }
  func.func @transform_1(%arg0: i32) -> (i32, i32) {
    %c0_i32 = arith.constant 0 : i32
    %c0_i32_0 = arith.constant 0 : i32
    %c0_i32_1 = arith.constant 0 : i32
    return %c0_i32, %c0_i32_0 : i32, i32
  }
  func.func @transform_2(%arg0: i32) -> (i32, i32) {
    %c0_i32 = arith.constant 0 : i32
    %c0_i32_0 = arith.constant 0 : i32
    %c0_i32_1 = arith.constant 0 : i32
    return %c0_i32, %c0_i32_0 : i32, i32
  }
  func.func @transform_3(%arg0: i32) -> (i32, i32) {
    %c0_i32 = arith.constant 0 : i32
    %c0_i32_0 = arith.constant 0 : i32
    %c0_i32_1 = arith.constant 0 : i32
    return %c0_i32, %c0_i32_0 : i32, i32
  }
  func.func @transform_4(%arg0: i32) -> (i32, i32) {
    %c0_i32 = arith.constant 0 : i32
    %c0_i32_0 = arith.constant 0 : i32
    %c0_i32_1 = arith.constant 0 : i32
    return %c0_i32, %c0_i32_0 : i32, i32
  }
  func.func @transform_5(%arg0: i32) -> (i32, i32) {
    %c0_i32 = arith.constant 0 : i32
    %c0_i32_0 = arith.constant 0 : i32
    %c0_i32_1 = arith.constant 0 : i32
    return %c0_i32, %c0_i32_0 : i32, i32
  }
  func.func @transform_6(%arg0: i32) -> (i32, i32) {
    %c0_i32 = arith.constant 0 : i32
    %c0_i32_0 = arith.constant 0 : i32
    return %arg0, %c0_i32 : i32, i32
  }
}

</mosaic_0001>

<llo_original>
// kernel: projection_head_forward.1
$region0: #{projection_head_forward.1}
  #allocation0 [shape = 'u32[]', space=smem, size = 0x4, offset = 0x4, fixed_abs, tag = 'smem constant byte address 0x4 - core index']
  #allocation1 [shape = 'u32[72,128]{1,0:T(1,128)}', space=vmem, size = 0x9000, scoped, tag = 'internal scratch']
  %s0 = inlined_call_operand.vmem [shape: f32[16,128], index: 0, kind: input, shape index: {}]
  %s1 = inlined_call_operand.vmem [shape: bf16[128,128], index: 1, kind: input, shape index: {}]
  %s2 = inlined_call_operand.vmem [shape: f32[1,128], index: 2, kind: input, shape index: {}]
  %s3 = inlined_call_operand.vmem [shape: bf16[128,128], index: 3, kind: input, shape index: {}]
  %s4 = inlined_call_operand.vmem [shape: f32[1,128], index: 4, kind: input, shape index: {}]
  %s5 = inlined_call_operand.vmem [shape: f32[1,128], index: 5, kind: input, shape index: {}]
  %s6 = inlined_call_operand.vmem [shape: f32[16,128], index: 6, kind: output, shape index: {}]
  %s7 = sld [smem:[#allocation0]]
  $region34: #{projection_head_forward.1} parent=0
    _
  %s9 = ssub.s32 1, %s7
  %s10 = scalar_select 0, %s9, %s7
  // Predicated region
  $region2: #{projection_head_forward.1} parent=0 // pred_check
    _
  $region3: #{projection_head_forward.1} parent=0 // pred_check_branch
    %12 = sbr.rel (0) target = $region5
  $region4: #{projection_head_forward.1} parent=0 // pred_region
    _
  $region5: #{projection_head_forward.1} parent=0 // pred_fallthru
    _
  // Predicated region
  $region6: #{projection_head_forward.1} parent=0 // pred_check
    _
  $region7: #{projection_head_forward.1} parent=0 // pred_check_branch
    %14 = sbr.rel (0) target = $region9
  $region8: #{projection_head_forward.1} parent=0 // pred_region
    _
  $region9: #{projection_head_forward.1} parent=0 // pred_fallthru
    _
  // Predicated region
  $region10: #{projection_head_forward.1} parent=0 // pred_check
    _
  $region11: #{projection_head_forward.1} parent=0 // pred_check_branch
    %16 = sbr.rel (0) target = $region13
  $region12: #{projection_head_forward.1} parent=0 // pred_region
    _
  $region13: #{projection_head_forward.1} parent=0 // pred_fallthru
    _
  // Predicated region
  $region14: #{projection_head_forward.1} parent=0 // pred_check
    _
  $region15: #{projection_head_forward.1} parent=0 // pred_check_branch
    %18 = sbr.rel (0) target = $region17
  $region16: #{projection_head_forward.1} parent=0 // pred_region
    _
  $region17: #{projection_head_forward.1} parent=0 // pred_fallthru
    _
  // Predicated region
  $region18: #{projection_head_forward.1} parent=0 // pred_check
    _
  $region19: #{projection_head_forward.1} parent=0 // pred_check_branch
    %20 = sbr.rel (0) target = $region21
  $region20: #{projection_head_forward.1} parent=0 // pred_region
    _
  $region21: #{projection_head_forward.1} parent=0 // pred_fallthru
    _
  // Predicated region
  $region22: #{projection_head_forward.1} parent=0 // pred_check
    _
  $region23: #{projection_head_forward.1} parent=0 // pred_check_branch
    %22 = sbr.rel (0) target = $region25
  $region24: #{projection_head_forward.1} parent=0 // pred_region
    _
  $region25: #{projection_head_forward.1} parent=0 // pred_fallthru
    _
  %v23 = vld [vmem:[%s0] sm:$0xff]
  %v24 = vld [vmem:[%s0 + $0x8] sm:$0xff]
  %v25 = vpack.c.bf16 %v24, %v23
  %v26 = vld [vmem:[%s1] sm:$0xf]
  %v27 = vld [vmem:[%s1 + $0x4] sm:$0xf]
  %v28 = vld [vmem:[%s1 + $0x8] sm:$0xf]
  %v29 = vld [vmem:[%s1 + $0xc] sm:$0xf]
  %v30 = vld [vmem:[%s1 + $0x10] sm:$0xf]
  %v31 = vld [vmem:[%s1 + $0x14] sm:$0xf]
  %v32 = vld [vmem:[%s1 + $0x18] sm:$0xf]
  %v33 = vld [vmem:[%s1 + $0x1c] sm:$0xf]
  %v34 = vld [vmem:[%s1 + $0x20] sm:$0xf]
  %v35 = vld [vmem:[%s1 + $0x24] sm:$0xf]
  %v36 = vld [vmem:[%s1 + $0x28] sm:$0xf]
  %v37 = vld [vmem:[%s1 + $0x2c] sm:$0xf]
  %v38 = vld [vmem:[%s1 + $0x30] sm:$0xf]
  %v39 = vld [vmem:[%s1 + $0x34] sm:$0xf]
  %v40 = vld [vmem:[%s1 + $0x38] sm:$0xf]
  %v41 = vld [vmem:[%s1 + $0x3c] sm:$0xf]
  %v42 = vld [vmem:[%s2] sm:$0x1]
  %v44 = vperm.slane %v42, 0
  %v62 = vunpack.c.l.b16 %v26
  %v63 = vunpack.c.l.b16 %v27
  %v64 = vunpack.c.l.b16 %v28
  %v65 = vunpack.c.l.b16 %v29
  %v66 = vunpack.c.l.b16 %v30
  %v67 = vunpack.c.l.b16 %v31
  %v68 = vunpack.c.l.b16 %v32
  %v69 = vunpack.c.l.b16 %v33
  %v70 = vunpack.c.l.b16 %v34
  %v71 = vunpack.c.l.b16 %v35
  %v72 = vunpack.c.l.b16 %v36
  %v73 = vunpack.c.l.b16 %v37
  %v74 = vunpack.c.l.b16 %v38
  %v75 = vunpack.c.l.b16 %v39
  %v76 = vunpack.c.l.b16 %v40
  %v77 = vunpack.c.l.b16 %v41
  %v78 = vpack.c.b16 %v63, %v62
  %v79 = vpack.c.b16 %v65, %v64
  %v80 = vpack.c.b16 %v67, %v66
  %v81 = vpack.c.b16 %v69, %v68
  %v82 = vpack.c.b16 %v71, %v70
  %v83 = vpack.c.b16 %v73, %v72
  %v84 = vpack.c.b16 %v75, %v74
  %v85 = vpack.c.b16 %v77, %v76
  %94 = vmatpush.bf16.msra.mxu0 %v85
  %95 = vmatpush.bf16.msra.mxu0 %v84
  %96 = vmatpush.bf16.msra.mxu0 %v83
  %97 = vmatpush.bf16.msra.mxu0 %v82
  %98 = vmatpush.bf16.msra.mxu0 %v81
  %99 = vmatpush.bf16.msra.mxu0 %v80
  %100 = vmatpush.bf16.msra.mxu0 %v79
  %101 = vmatpush.bf16.msra.mxu0 %v78
  %102 = vmatmul.bf16.gmra.mxu0 %v25
  %v103 = vpop.f32.mrf.mxu0
  %v104 = vadd.f32 %v44, %v103
  %v105 = vpop.f32.mrf.mxu0
  %v106 = vadd.f32 %v44, %v105
  %107 = vdwg.mxu0
  %v108 = vmax.f32 %v104, 0.0
  %v109 = vmax.f32 %v106, 0.0
  %v110 = vpack.c.bf16 %v109, %v108
  %v111 = vld [vmem:[%s3] sm:$0xf]
  %v112 = vld [vmem:[%s3 + $0x4] sm:$0xf]
  %v113 = vld [vmem:[%s3 + $0x8] sm:$0xf]
  %v114 = vld [vmem:[%s3 + $0xc] sm:$0xf]
  %v115 = vld [vmem:[%s3 + $0x10] sm:$0xf]
  %v116 = vld [vmem:[%s3 + $0x14] sm:$0xf]
  %v117 = vld [vmem:[%s3 + $0x18] sm:$0xf]
  %v118 = vld [vmem:[%s3 + $0x1c] sm:$0xf]
  %v119 = vld [vmem:[%s3 + $0x20] sm:$0xf]
  %v120 = vld [vmem:[%s3 + $0x24] sm:$0xf]
  %v121 = vld [vmem:[%s3 + $0x28] sm:$0xf]
  %v122 = vld [vmem:[%s3 + $0x2c] sm:$0xf]
  %v123 = vld [vmem:[%s3 + $0x30] sm:$0xf]
  %v124 = vld [vmem:[%s3 + $0x34] sm:$0xf]
  %v125 = vld [vmem:[%s3 + $0x38] sm:$0xf]
  %v126 = vld [vmem:[%s3 + $0x3c] sm:$0xf]
  %v143 = vunpack.c.l.b16 %v111
  %v144 = vunpack.c.l.b16 %v112
  %v145 = vunpack.c.l.b16 %v113
  %v146 = vunpack.c.l.b16 %v114
  %v147 = vunpack.c.l.b16 %v115
  %v148 = vunpack.c.l.b16 %v116
  %v149 = vunpack.c.l.b16 %v117
  %v150 = vunpack.c.l.b16 %v118
  %v151 = vunpack.c.l.b16 %v119
  %v152 = vunpack.c.l.b16 %v120
  %v153 = vunpack.c.l.b16 %v121
  %v154 = vunpack.c.l.b16 %v122
  %v155 = vunpack.c.l.b16 %v123
  %v156 = vunpack.c.l.b16 %v124
  %v157 = vunpack.c.l.b16 %v125
  %v158 = vunpack.c.l.b16 %v126
  %v159 = vpack.c.b16 %v144, %v143
  %v160 = vpack.c.b16 %v146, %v145
  %v161 = vpack.c.b16 %v148, %v147
  %v162 = vpack.c.b16 %v150, %v149
  %v163 = vpack.c.b16 %v152, %v151
  %v164 = vpack.c.b16 %v154, %v153
  %v165 = vpack.c.b16 %v156, %v155
  %v166 = vpack.c.b16 %v158, %v157
  %175 = vmatpush.bf16.msra.mxu0 %v166
  %176 = vmatpush.bf16.msra.mxu0 %v165
  %177 = vmatpush.bf16.msra.mxu0 %v164
  %178 = vmatpush.bf16.msra.mxu0 %v163
  %179 = vmatpush.bf16.msra.mxu0 %v162
  %180 = vmatpush.bf16.msra.mxu0 %v161
  %181 = vmatpush.bf16.msra.mxu0 %v160
  %182 = vmatpush.bf16.msra.mxu0 %v159
  %183 = vmatmul.bf16.gmra.mxu0 %v110
  %v184 = vpop.f32.mrf.mxu0
  %v185 = vadd.f32 0.0, %v184
  %v186 = vpop.f32.mrf.mxu0
  %v187 = vadd.f32 0.0, %v186
  %188 = vdwg.mxu0
  %v189 = vld [vmem:[%s4] sm:$0x1]
  %v191 = vperm.slane %v189, 0
  %v193 = vmul.f32 %v185, %v191
  %v194 = vmul.f32 %v187, %v191
  %v195 = vld [vmem:[%s5] sm:$0x1]
  %v197 = vperm.slane %v195, 0
  %v199 = vadd.f32 %v193, %v197
  %v200 = vadd.f32 %v194, %v197
  %v201 = vmul.f32 %v199, %v199
  %v202 = vmul.f32 %v200, %v200
  %203 = vadd.xlane.f32.xlu0 %v201
  %v204 = vpop.xlane.xlu0 %203
  %205 = vadd.xlane.f32.xlu0 %v202
  %v206 = vpop.xlane.xlu0 %205
  %v207 = vmax.f32 %v204, 1e-24
  %v208 = vmax.f32 %v206, 1e-24
  %v209 = vrsqrt.pop %v207
  %v210 = vmul.f32 %v209, %v207
  %v211 = vmul.f32 %v210, %v209
  %v212 = vmul.f32 0.5, %v211
  %v213 = vsub.f32 1.5, %v212
  %v214 = vmul.f32 %v209, %v213
  %vm215 = vweird.f32 %v207
  %vm216 = vweird.f32 %v209
  %vm217 = vmor %vm215, %vm216
  %v218 = vsel %vm217, %v209, %v214
  %v219 = vrsqrt.pop %v208
  %v220 = vmul.f32 %v219, %v208
  %v221 = vmul.f32 %v220, %v219
  %v222 = vmul.f32 0.5, %v221
  %v223 = vsub.f32 1.5, %v222
  %v224 = vmul.f32 %v219, %v223
  %vm225 = vweird.f32 %v208
  %vm226 = vweird.f32 %v219
  %vm227 = vmor %vm225, %vm226
  %v228 = vsel %vm227, %v219, %v224
  %v229 = vmul.f32 %v199, %v218
  %v230 = vmul.f32 %v200, %v228
  %231 = vst [vmem:[%s6] sm:$0xff] %v229
  %232 = vst [vmem:[%s6 + $0x8] sm:$0xff] %v230
  // Predicated region
  $region26: #{projection_head_forward.1} parent=0 // pred_check
    _
  $region27: #{projection_head_forward.1} parent=0 // pred_check_branch
    %234 = sbr.rel (0) target = $region29
  $region28: #{projection_head_forward.1} parent=0 // pred_region
    _
  $region29: #{projection_head_forward.1} parent=0 // pred_fallthru
    _
  // Predicated region
  $region30: #{projection_head_forward.1} parent=0 // pred_check
    _
  $region31: #{projection_head_forward.1} parent=0 // pred_check_branch
    %236 = sbr.rel (0) target = $region33
  $region32: #{projection_head_forward.1} parent=0 // pred_region
    _
  $region33: #{projection_head_forward.1} parent=0 // pred_fallthru
    _

</llo_original>
